<compile_context>
chip_gen: v7x
topology: tpu7x:2x2x1
jax: 0.10.0
libtpu: 0.0.40
codegen_flags: <defaults>
</compile_context>

<pallas_src>
import functools

import jax
import jax.numpy as jnp
from jax.experimental import pallas as pl
from jax.experimental.pallas import tpu as pltpu


# --------------------- Pass 1: mean over L + FC excitation -----------------------------

def _se_reduce_excite_kernel(x_ref, w1_ref, b1_ref, w2_ref, b2_ref, s_ref, *, inv_len):
    """Grid: (B_tiles, L_tiles); the L axis is a reduction ("arbitrary").

    x_ref : (TB, C, TL) input tile
    w1_ref: (C, H)  b1_ref: (1, H)  w2_ref: (H, C)  b2_ref: (1, C)
    s_ref : (TB, C) f32 output; doubles as the running-sum accumulator across L tiles.
    """
    l = pl.program_id(1)

    @pl.when(l == 0)
    def _init():
        s_ref[...] = jnp.zeros_like(s_ref)

    # Partial sum over this L tile, accumulated in f32.
    s_ref[...] += jnp.sum(x_ref[...].astype(jnp.float32), axis=-1)

    @pl.when(l == pl.num_programs(1) - 1)
    def _finalize():
        avg = s_ref[...] * inv_len                                              # (TB, C)
        h = jnp.dot(avg, w1_ref[...], preferred_element_type=jnp.float32) + b1_ref[...]
        h = jnp.maximum(h, 0.0)                                                 # (TB, H)
        z = jnp.dot(h, w2_ref[...], preferred_element_type=jnp.float32) + b2_ref[...]
        s_ref[...] = jax.nn.sigmoid(z)                                          # (TB, C)


# --------------------- Pass 2: broadcast scale (fully parallel) -------------------------

def _se_scale_kernel(x_ref, s_ref, o_ref):
    """x_ref: (TB, C, TL); s_ref: (TB, C, 1); o_ref: (TB, C, TL)."""
    x = x_ref[...].astype(jnp.float32)
    o_ref[...] = (x * s_ref[...]).astype(o_ref.dtype)


# --------------------------------- tiling helpers ---------------------------------------

def _pick_batch_tile(B):
    # (TB, C) blocks need TB % 8 == 0 or TB == B (second-minor constraint).
    return 8 if (B % 8 == 0 and B > 8) else B


def _pick_len_tile(TB, C, L, itemsize, target_bytes=2 << 20):
    # Largest multiple-of-128 divisor of L whose (TB, C, TL) tile fits ~2 MiB;
    # otherwise the smallest such divisor; otherwise full L (tiny / awkward L).
    divisors = [t for t in range(128, L + 1, 128) if L % t == 0]
    if not divisors:
        return L
    fitting = [t for t in divisors if TB * C * t * itemsize <= target_bytes]
    return max(fitting) if fitting else min(divisors)


# --------------------------------- wrapper ----------------------------------------------

def squeeze_excitation(x, w1, b1, w2, b2):
    """x: (B, C, L); w1: (C, H); b1: (1, H); w2: (H, C); b2: (1, C)."""
    B, C, L = x.shape
    H = w1.shape[1]
    itemsize = jnp.dtype(x.dtype).itemsize

    TB = _pick_batch_tile(B)
    TL = _pick_len_tile(TB, C, L, itemsize)
    grid = (B // TB, L // TL)
    vmem_limit = 32 * 1024 * 1024  # safe on v5e/v6e/v7x

    # ---- pass 1: per-(B, C) mean over L + batched Linear-ReLU-Linear-Sigmoid ----
    reduce_cost = pl.CostEstimate(
        flops=int(B * C * L + 2 * 2 * B * C * H),
        transcendentals=int(B * C),
        bytes_accessed=int(B * C * L * itemsize + (C * H + H + H * C + C) * 4 + B * C * 4),
    )
    s = pl.pallas_call(
        functools.partial(_se_reduce_excite_kernel, inv_len=1.0 / L),
        out_shape=jax.ShapeDtypeStruct((B, C), jnp.float32),
        grid=grid,
        in_specs=[
            pl.BlockSpec((TB, C, TL), lambda b, l: (b, 0, l)),
            pl.BlockSpec((C, H), lambda b, l: (0, 0)),
            pl.BlockSpec((1, H), lambda b, l: (0, 0)),
            pl.BlockSpec((H, C), lambda b, l: (0, 0)),
            pl.BlockSpec((1, C), lambda b, l: (0, 0)),
        ],
        out_specs=pl.BlockSpec((TB, C), lambda b, l: (b, 0)),
        compiler_params=pltpu.CompilerParams(
            dimension_semantics=("parallel", "arbitrary"),
            vmem_limit_bytes=vmem_limit,
        ),
        cost_estimate=reduce_cost,
    )(x, w1, b1, w2, b2)

    # Present the gate as (B, C, 1) so the in-kernel broadcast is a cheap lane-broadcast.
    s3 = s.reshape(B, C, 1)

    # ---- pass 2: out = x * s, streaming lane-dense (TB, C, TL) tiles ----
    scale_cost = pl.CostEstimate(
        flops=int(B * C * L),
        transcendentals=0,
        bytes_accessed=int(2 * B * C * L * itemsize + B * C * 4),
    )
    out = pl.pallas_call(
        _se_scale_kernel,
        out_shape=jax.ShapeDtypeStruct((B, C, L), x.dtype),
        grid=grid,
        in_specs=[
            pl.BlockSpec((TB, C, TL), lambda b, l: (b, 0, l)),
            pl.BlockSpec((TB, C, 1), lambda b, l: (b, 0, 0)),
        ],
        out_specs=pl.BlockSpec((TB, C, TL), lambda b, l: (b, 0, l)),
        compiler_params=pltpu.CompilerParams(
            dimension_semantics=("parallel", "parallel"),
            vmem_limit_bytes=vmem_limit,
        ),
        cost_estimate=scale_cost,
    )(x, s3)
    return out


# --------------------------------- reference & test -------------------------------------

def se_reference(x, w1, b1, w2, b2):
    avg = jnp.mean(x, axis=-1)                           # (B, C)
    h = jnp.maximum(avg @ w1 + b1, 0.0)                  # (B, H)
    s = jax.nn.sigmoid(h @ w2 + b2)                      # (B, C)
    return x * s[..., None]


if __name__ == "__main__":
    B, C, L = 2, 4, 16
    mlp_ratio = 4
    H = C * mlp_ratio

    key = jax.random.PRNGKey(0)
    kx, k1, k2, k3, k4 = jax.random.split(key, 5)

    x = jax.random.normal(kx, (B, C, L), dtype=jnp.float32)
    # Deterministic synthetic parameters (stored pre-transposed: y = x @ W + b).
    w1 = jax.random.normal(k1, (C, H), dtype=jnp.float32) * 0.1
    b1 = jax.random.normal(k2, (1, H), dtype=jnp.float32) * 0.1
    w2 = jax.random.normal(k3, (H, C), dtype=jnp.float32) * 0.1
    b2 = jax.random.normal(k4, (1, C), dtype=jnp.float32) * 0.1

    out = jax.block_until_ready(squeeze_excitation(x, w1, b1, w2, b2))
    ref = se_reference(x, w1, b1, w2, b2)

    assert out.shape == (B, C, L)
    assert jnp.allclose(out, ref, atol=1e-5, rtol=1e-5), "mismatch vs reference"

    print("KERNEL_OK")
</pallas_src>

<mosaic_0001>
module attributes {stable_mosaic.version = 11 : i64} {
  func.func @_se_reduce_excite_kernel(%arg0: i32, %arg1: i32, %arg2: memref<2x4x16xf32, #tpu.memory_space<vmem>>, %arg3: memref<4x16xf32, #tpu.memory_space<vmem>>, %arg4: memref<1x16xf32, #tpu.memory_space<vmem>>, %arg5: memref<16x4xf32, #tpu.memory_space<vmem>>, %arg6: memref<1x4xf32, #tpu.memory_space<vmem>>, %arg7: memref<2x4xf32, #tpu.memory_space<vmem>>) attributes {dimension_semantics = [#tpu.dimension_semantics<parallel>, #tpu.dimension_semantics<arbitrary>], iteration_bounds = array<i64: 1, 1>, scalar_prefetch = 0 : i64, scratch_operands = 0 : i64, tpu.core_type = #tpu.core_type<tc>, window_params = [{transform_indices = @transform_0, window_bounds = array<i64: 2, 4, 16>}, {pipeline_mode = #tpu.pipeline_mode<synchronous>, transform_indices = @transform_1, window_bounds = array<i64: 4, 16>}, {pipeline_mode = #tpu.pipeline_mode<synchronous>, transform_indices = @transform_2, window_bounds = array<i64: 1, 16>}, {pipeline_mode = #tpu.pipeline_mode<synchronous>, transform_indices = @transform_3, window_bounds = array<i64: 16, 4>}, {pipeline_mode = #tpu.pipeline_mode<synchronous>, transform_indices = @transform_4, window_bounds = array<i64: 1, 4>}, {transform_indices = @transform_5, window_bounds = array<i64: 2, 4>}]} {
    %c0_i32 = arith.constant 0 : i32
    %0 = arith.cmpi eq, %arg1, %c0_i32 : i32
    %1 = arith.extui %0 : i1 to i32
    %c0_i32_0 = arith.constant 0 : i32
    %2 = arith.cmpi ne, %1, %c0_i32_0 : i32
    scf.if %2 {
      %cst_9 = arith.constant 0.000000e+00 : f32
      %11 = vector.broadcast %cst_9 : f32 to vector<2x4xf32>
      %c0_10 = arith.constant 0 : index
      %c0_11 = arith.constant 0 : index
      %12 = vector.load %arg7[%c0_10, %c0_11] : memref<2x4xf32, #tpu.memory_space<vmem>>, vector<2x4xf32>
      tpu.vector_store %arg7[%c0_10, %c0_11], %11 {strides = array<i32>} : memref<2x4xf32, #tpu.memory_space<vmem>>, vector<2x4xf32>,
    } else {
    }
    %c0 = arith.constant 0 : index
    %c0_1 = arith.constant 0 : index
    %3 = vector.load %arg7[%c0, %c0_1] : memref<2x4xf32, #tpu.memory_space<vmem>>, vector<2x4xf32>
    %c0_2 = arith.constant 0 : index
    %c0_3 = arith.constant 0 : index
    %c0_4 = arith.constant 0 : index
    %4 = vector.load %arg2[%c0_2, %c0_3, %c0_4] : memref<2x4x16xf32, #tpu.memory_space<vmem>>, vector<2x4x16xf32>
    %cst = arith.constant dense<0.000000e+00> : vector<2x4xf32>
    %5 = vector.multi_reduction <add>, %4, %cst [2] : vector<2x4x16xf32> to vector<2x4xf32>
    %6 = arith.addf %3, %5 : vector<2x4xf32>
    %c0_5 = arith.constant 0 : index
    %c0_6 = arith.constant 0 : index
    %7 = vector.load %arg7[%c0_5, %c0_6] : memref<2x4xf32, #tpu.memory_space<vmem>>, vector<2x4xf32>
    tpu.vector_store %arg7[%c0_5, %c0_6], %6 {strides = array<i32>} : memref<2x4xf32, #tpu.memory_space<vmem>>, vector<2x4xf32>,
    %c0_i32_7 = arith.constant 0 : i32
    %8 = arith.cmpi eq, %arg1, %c0_i32_7 : i32
    %9 = arith.extui %8 : i1 to i32
    %c0_i32_8 = arith.constant 0 : i32
    %10 = arith.cmpi ne, %9, %c0_i32_8 : i32
    scf.if %10 {
      %c0_9 = arith.constant 0 : index
      %c0_10 = arith.constant 0 : index
      %11 = vector.load %arg7[%c0_9, %c0_10] : memref<2x4xf32, #tpu.memory_space<vmem>>, vector<2x4xf32>
      %cst_11 = arith.constant 6.250000e-02 : f32
      %12 = vector.broadcast %cst_11 : f32 to vector<2x4xf32>
      %13 = arith.mulf %11, %12 : vector<2x4xf32>
      %c0_12 = arith.constant 0 : index
      %c0_13 = arith.constant 0 : index
      %14 = vector.load %arg3[%c0_12, %c0_13] : memref<4x16xf32, #tpu.memory_space<vmem>>, vector<4x16xf32>
      %cst_14 = arith.constant dense<0.000000e+00> : vector<2x16xf32>
      %15 = tpu.matmul %13, %14, %cst_14 {dimension_numbers = #tpu.dot_dimension_numbers<[1], [0], [0], [1], [0, 0, 1, 1], [], []>} : vector<2x4xf32>, vector<4x16xf32>, vector<2x16xf32> -> vector<2x16xf32>
      %c0_15 = arith.constant 0 : index
      %c0_16 = arith.constant 0 : index
      %16 = vector.load %arg4[%c0_15, %c0_16] : memref<1x16xf32, #tpu.memory_space<vmem>>, vector<1x16xf32>
      %17 = vector.broadcast %16 : vector<1x16xf32> to vector<2x16xf32>
      %18 = arith.addf %15, %17 : vector<2x16xf32>
      %cst_17 = arith.constant 0.000000e+00 : f32
      %19 = vector.broadcast %cst_17 : f32 to vector<2x16xf32>
      %20 = arith.maximumf %18, %19 : vector<2x16xf32>
      %c0_18 = arith.constant 0 : index
      %c0_19 = arith.constant 0 : index
      %21 = vector.load %arg5[%c0_18, %c0_19] : memref<16x4xf32, #tpu.memory_space<vmem>>, vector<16x4xf32>
      %cst_20 = arith.constant dense<0.000000e+00> : vector<2x4xf32>
      %22 = tpu.matmul %20, %21, %cst_20 {dimension_numbers = #tpu.dot_dimension_numbers<[1], [0], [0], [1], [0, 0, 1, 1], [], []>} : vector<2x16xf32>, vector<16x4xf32>, vector<2x4xf32> -> vector<2x4xf32>
      %c0_21 = arith.constant 0 : index
      %c0_22 = arith.constant 0 : index
      %23 = vector.load %arg6[%c0_21, %c0_22] : memref<1x4xf32, #tpu.memory_space<vmem>>, vector<1x4xf32>
      %24 = vector.broadcast %23 : vector<1x4xf32> to vector<2x4xf32>
      %25 = arith.addf %22, %24 : vector<2x4xf32>
      %26 = arith.negf %25 : vector<2x4xf32>
      %27 = math.exp %26 : vector<2x4xf32>
      %cst_23 = arith.constant 1.000000e+00 : f32
      %28 = vector.broadcast %cst_23 : f32 to vector<2x4xf32>
      %29 = arith.addf %28, %27 : vector<2x4xf32>
      %30 = arith.divf %28, %29 : vector<2x4xf32>
      %c0_24 = arith.constant 0 : index
      %c0_25 = arith.constant 0 : index
      %31 = vector.load %arg7[%c0_24, %c0_25] : memref<2x4xf32, #tpu.memory_space<vmem>>, vector<2x4xf32>
      tpu.vector_store %arg7[%c0_24, %c0_25], %30 {strides = array<i32>} : memref<2x4xf32, #tpu.memory_space<vmem>>, vector<2x4xf32>,
    } else {
    }
    return
  }
  func.func @transform_0(%arg0: i32, %arg1: i32) -> (i32, i32, i32) {
    %c0_i32 = arith.constant 0 : i32
    %c0_i32_0 = arith.constant 0 : i32
    return %arg0, %c0_i32, %arg1 : i32, i32, i32
  }
  func.func @transform_1(%arg0: i32, %arg1: i32) -> (i32, i32) {
    %c0_i32 = arith.constant 0 : i32
    %c0_i32_0 = arith.constant 0 : i32
    %c0_i32_1 = arith.constant 0 : i32
    return %c0_i32, %c0_i32_0 : i32, i32
  }
  func.func @transform_2(%arg0: i32, %arg1: i32) -> (i32, i32) {
    %c0_i32 = arith.constant 0 : i32
    %c0_i32_0 = arith.constant 0 : i32
    %c0_i32_1 = arith.constant 0 : i32
    return %c0_i32, %c0_i32_0 : i32, i32
  }
  func.func @transform_3(%arg0: i32, %arg1: i32) -> (i32, i32) {
    %c0_i32 = arith.constant 0 : i32
    %c0_i32_0 = arith.constant 0 : i32
    %c0_i32_1 = arith.constant 0 : i32
    return %c0_i32, %c0_i32_0 : i32, i32
  }
  func.func @transform_4(%arg0: i32, %arg1: i32) -> (i32, i32) {
    %c0_i32 = arith.constant 0 : i32
    %c0_i32_0 = arith.constant 0 : i32
    %c0_i32_1 = arith.constant 0 : i32
    return %c0_i32, %c0_i32_0 : i32, i32
  }
  func.func @transform_5(%arg0: i32, %arg1: i32) -> (i32, i32) {
    %c0_i32 = arith.constant 0 : i32
    %c0_i32_0 = arith.constant 0 : i32
    return %arg0, %c0_i32 : i32, i32
  }
}

</mosaic_0001>

<llo_original>
// kernel: tpu_custom_call.1
$region0: #{tpu_custom_call.1}
  #allocation0 [shape = 'u32[]', space=smem, size = 0x4, offset = 0x4, fixed_abs, tag = 'smem constant byte address 0x4 - core index']
  #allocation1 [shape = 'u32[144,128]{1,0:T(1,128)}', space=vmem, size = 0x12000, scoped, tag = 'internal scratch']
  %s0 = inlined_call_operand.vmem [shape: f32[2,4,16], index: 0, kind: input, shape index: {}]
  %s1 = inlined_call_operand.vmem [shape: f32[4,16], index: 1, kind: input, shape index: {}]
  %s2 = inlined_call_operand.vmem [shape: f32[1,16], index: 2, kind: input, shape index: {}]
  %s3 = inlined_call_operand.vmem [shape: f32[16,4], index: 3, kind: input, shape index: {}]
  %s4 = inlined_call_operand.vmem [shape: f32[1,4], index: 4, kind: input, shape index: {}]
  %s5 = inlined_call_operand.hbm [shape: f32[2,4], index: 5, kind: output, shape index: {}]
  %s6 = sld [smem:[#allocation0]]
  $region38: #{tpu_custom_call.1} parent=0
    _
  %s8 = ssub.s32 1, %s6
  %s9 = scalar_select 0, %s8, %s6
  $region1: #{tpu_custom_call.1} parent=0
    #allocation2 [shape = 'u8[1024]{0}', space=vmem, size = 0x400, scoped, tag = 'output window, operand 0, single buffered']
    #allocation3 [shape = 's32[1]{0}', space=sflag, size = 0x4, scoped, tag = 'scoped memory for tpu_custom_call.1']
    %10 = vsyncpa [#allocation3], 0
    // Predicated region
    $region2: #{tpu_custom_call.1} parent=1 // pred_check
      _
    $region3: #{tpu_custom_call.1} parent=1 // pred_check_branch
      %12 = sbr.rel (0) target = $region5
    $region4: #{tpu_custom_call.1} parent=1 // pred_region
      _
    $region5: #{tpu_custom_call.1} parent=1 // pred_fallthru
      _
    // Predicated region
    $region6: #{tpu_custom_call.1} parent=1 // pred_check
      _
    $region7: #{tpu_custom_call.1} parent=1 // pred_check_branch
      %14 = sbr.rel (0) target = $region9
    $region8: #{tpu_custom_call.1} parent=1 // pred_region
      _
    $region9: #{tpu_custom_call.1} parent=1 // pred_fallthru
      _
    // Predicated region
    $region10: #{tpu_custom_call.1} parent=1 // pred_check
      _
    $region11: #{tpu_custom_call.1} parent=1 // pred_check_branch
      %16 = sbr.rel (0) target = $region13
    $region12: #{tpu_custom_call.1} parent=1 // pred_region
      _
    $region13: #{tpu_custom_call.1} parent=1 // pred_fallthru
      _
    // Predicated region
    $region14: #{tpu_custom_call.1} parent=1 // pred_check
      _
    $region15: #{tpu_custom_call.1} parent=1 // pred_check_branch
      %18 = sbr.rel (0) target = $region17
    $region16: #{tpu_custom_call.1} parent=1 // pred_region
      _
    $region17: #{tpu_custom_call.1} parent=1 // pred_fallthru
      _
    // Predicated region
    $region18: #{tpu_custom_call.1} parent=1 // pred_check
      _
    $region19: #{tpu_custom_call.1} parent=1 // pred_check_branch
      %20 = sbr.rel (0) target = $region21
    $region20: #{tpu_custom_call.1} parent=1 // pred_region
      _
    $region21: #{tpu_custom_call.1} parent=1 // pred_fallthru
      _
    %p21 = scmp.eq.s32.totalorder 0, 0
    // Predicated region
    $region22: #{tpu_custom_call.1} parent=1 // pred_check
      %p22 = pneg %p21
    $region23: #{tpu_custom_call.1} parent=1 // pred_check_branch
      %24 = sbr.rel (%p22) target = $region25
    $region24: #{tpu_custom_call.1} parent=1 // pred_region
      %vm25 = vcmask 25600
      %26 = vst.msk [vmem:[#allocation2] sm:$0x3] %vm25, 0.0
    $region25: #{tpu_custom_call.1} parent=1 // pred_fallthru
      _
    %v27 = vld [vmem:[#allocation2] sm:$0x3]
    %v28 = vld [vmem:[%s0] sm:$0xf]
    %v29 = vld [vmem:[%s0 + $0x4] sm:$0xf]
    %vm30 = vcmask 125952
    %v31 = vsel %vm30, %v28, 0.0
    %32 = vadd.xlane.f32.xlu0 %v31
    %v33 = vpop.xlane.xlu0 %32
    %v34 = vsel %vm30, %v29, 0.0
    %35 = vadd.xlane.f32.xlu0 %v34
    %v36 = vpop.xlane.xlu0 %35
    %v39 = vlaneseq
    %v40 = vand.u32 %v39, 127
    %v41 = vlaneseq
    %v42 = vshrl.u32 %v41, 7
    %v43 = vsub.s32 %v40, %v42
    %v44 = vrot.slane %v33, %v43
    %v45 = vlaneseq
    %v46 = vshrl.u32 %v45, 7
    %v47 = vsub.s32 %v40, %v46
    %v48 = vrot.slane %v36, %v47
    %vm49 = vcmask 1041409
    %v50 = vsel %vm49, %v48, %v44
    %v52 = vadd.f32 %v27, %v50
    %vm53 = vcmask 25600
    %54 = vst.msk [vmem:[#allocation2] sm:$0x3] %vm53, %v52
    // Predicated region
    $region26: #{tpu_custom_call.1} parent=1 // pred_check
      %p55 = pneg %p21
    $region27: #{tpu_custom_call.1} parent=1 // pred_check_branch
      %57 = sbr.rel (%p55) target = $region29
    $region28: #{tpu_custom_call.1} parent=1 // pred_region
      %v58 = vld [vmem:[#allocation2] sm:$0x3]
      %v59 = vmul.f32 %v58, 0.0625
      %v60 = vld [vmem:[%s1] sm:$0xf]
      %v61 = vld [vmem:[%s2] sm:$0x1]
      %v63 = vlaneseq
      %v64 = vshrl.u32 %v63, 7
      %v65 = vsub.s32 0, %v64
      %v66 = vrot.slane %v61, %v65
      %vm68 = vcmask 31744
      %v70 = vsel %vm68, %v59, 0
      %vm72 = vcmask 1043456
      %v74 = vsel %vm72, %v60, 0
      %76 = vmatprep.subr.mxu0 0.0
      %77 = vmatpush1.msra.mxu0 %v74
      %78 = vmatprep.subr.mxu0 0.0
      %79 = vmatpush1.msra.mxu0 0.0
      %80 = vmatprep.subr.mxu0 0.0
      %81 = vmatpush1.msra.mxu0 0.0
      %82 = vmatprep.subr.mxu0 0.0
      %83 = vmatpush1.msra.mxu0 0.0
      %84 = vmatprep.subr.mxu0 0.0
      %85 = vmatpush1.msra.mxu0 0.0
      %86 = vmatprep.subr.mxu0 0.0
      %87 = vmatpush1.msra.mxu0 0.0
      %88 = vmatprep.subr.mxu0 0.0
      %89 = vmatpush1.msra.mxu0 0.0
      %90 = vmatprep.subr.mxu0 0.0
      %91 = vmatpush1.msra.mxu0 0.0
      %92 = vmatprep.subr.mxu0 0.0
      %93 = vmatpush1.msra.mxu0 0.0
      %94 = vmatprep.subr.mxu0 0.0
      %95 = vmatpush1.msra.mxu0 0.0
      %96 = vmatprep.subr.mxu0 0.0
      %97 = vmatpush1.msra.mxu0 0.0
      %98 = vmatprep.subr.mxu0 0.0
      %99 = vmatpush1.msra.mxu0 0.0
      %100 = vmatprep.subr.mxu0 0.0
      %101 = vmatpush1.msra.mxu0 0.0
      %102 = vmatprep.subr.mxu0 0.0
      %103 = vmatpush1.msra.mxu0 0.0
      %104 = vmatprep.subr.mxu0 0.0
      %105 = vmatpush1.msra.mxu0 0.0
      %106 = vmatprep.subr.mxu0 0.0
      %107 = vmatpush1.msra.mxu0 0.0
      %108 = vmatprep.subr.mxu0 0.0
      %109 = vmatpush1.msra.mxu0 0.0
      %110 = vmatprep.subr.mxu0 0.0
      %111 = vmatpush1.msra.mxu0 0.0
      %112 = vmatprep.subr.mxu0 0.0
      %113 = vmatpush1.msra.mxu0 0.0
      %114 = vmatprep.subr.mxu0 0.0
      %115 = vmatpush1.msra.mxu0 0.0
      %116 = vmatprep.subr.mxu0 0.0
      %117 = vmatpush1.msra.mxu0 0.0
      %118 = vmatprep.subr.mxu0 0.0
      %119 = vmatpush1.msra.mxu0 0.0
      %120 = vmatprep.subr.mxu0 0.0
      %121 = vmatpush1.msra.mxu0 0.0
      %122 = vmatprep.subr.mxu0 0.0
      %123 = vmatpush1.msra.mxu0 0.0
      %124 = vmatprep.subr.mxu0 0.0
      %125 = vmatpush1.msra.mxu0 0.0
      %126 = vmatprep.subr.mxu0 0.0
      %127 = vmatpush1.msra.mxu0 0.0
      %128 = vmatprep.subr.mxu0 0.0
      %129 = vmatpush1.msra.mxu0 0.0
      %130 = vmatprep.subr.mxu0 0.0
      %131 = vmatpush1.msra.mxu0 0.0
      %132 = vmatprep.subr.mxu0 0.0
      %133 = vmatpush1.msra.mxu0 0.0
      %134 = vmatprep.subr.mxu0 0.0
      %135 = vmatpush1.msra.mxu0 0.0
      %136 = vmatprep.subr.mxu0 0.0
      %137 = vmatpush1.msra.mxu0 0.0
      %138 = vmatprep.subr.mxu0 0.0
      %139 = vmatpush1.msra.mxu0 0.0
      %140 = vmatprep.mubr.f32.mxu0 0.0
      %141 = vmatmul.mubr.f32.gmra.mrb[0].mxu0 %v70
      %v142 = vpop.f32.mrb[0].mxu0
      %v143 = vadd.f32 %v66, %v142
      %v144 = vpop.f32.mrb[0].mxu0
      %145 = vdwg.mxu0
      %v146 = vmax.f32 %v143, 0.0
      %v147 = vld [vmem:[%s3] sm:$0xff]
      %v148 = vld [vmem:[%s3 + $0x8] sm:$0xff]
      %v149 = vld [vmem:[%s4] sm:$0x1]
      %v151 = vlaneseq
      %v152 = vshrl.u32 %v151, 7
      %v153 = vsub.s32 0, %v152
      %v154 = vrot.slane %v149, %v153
      %vm156 = vcmask 130048
      %v158 = vsel %vm156, %v146, 0
      %160 = vmatprep.subr.mxu0 0.0
      %161 = vmatpush1.msra.mxu0 %v147
      %162 = vmatprep.subr.mxu0 0.0
      %163 = vmatpush1.msra.mxu0 %v148
      %164 = vmatprep.subr.mxu0 0.0
      %165 = vmatpush1.msra.mxu0 0.0
      %166 = vmatprep.subr.mxu0 0.0
      %167 = vmatpush1.msra.mxu0 0.0
      %168 = vmatprep.subr.mxu0 0.0
      %169 = vmatpush1.msra.mxu0 0.0
      %170 = vmatprep.subr.mxu0 0.0
      %171 = vmatpush1.msra.mxu0 0.0
      %172 = vmatprep.subr.mxu0 0.0
      %173 = vmatpush1.msra.mxu0 0.0
      %174 = vmatprep.subr.mxu0 0.0
      %175 = vmatpush1.msra.mxu0 0.0
      %176 = vmatprep.subr.mxu0 0.0
      %177 = vmatpush1.msra.mxu0 0.0
      %178 = vmatprep.subr.mxu0 0.0
      %179 = vmatpush1.msra.mxu0 0.0
      %180 = vmatprep.subr.mxu0 0.0
      %181 = vmatpush1.msra.mxu0 0.0
      %182 = vmatprep.subr.mxu0 0.0
      %183 = vmatpush1.msra.mxu0 0.0
      %184 = vmatprep.subr.mxu0 0.0
      %185 = vmatpush1.msra.mxu0 0.0
      %186 = vmatprep.subr.mxu0 0.0
      %187 = vmatpush1.msra.mxu0 0.0
      %188 = vmatprep.subr.mxu0 0.0
      %189 = vmatpush1.msra.mxu0 0.0
      %190 = vmatprep.subr.mxu0 0.0
      %191 = vmatpush1.msra.mxu0 0.0
      %192 = vmatprep.subr.mxu0 0.0
      %193 = vmatpush1.msra.mxu0 0.0
      %194 = vmatprep.subr.mxu0 0.0
      %195 = vmatpush1.msra.mxu0 0.0
      %196 = vmatprep.subr.mxu0 0.0
      %197 = vmatpush1.msra.mxu0 0.0
      %198 = vmatprep.subr.mxu0 0.0
      %199 = vmatpush1.msra.mxu0 0.0
      %200 = vmatprep.subr.mxu0 0.0
      %201 = vmatpush1.msra.mxu0 0.0
      %202 = vmatprep.subr.mxu0 0.0
      %203 = vmatpush1.msra.mxu0 0.0
      %204 = vmatprep.subr.mxu0 0.0
      %205 = vmatpush1.msra.mxu0 0.0
      %206 = vmatprep.subr.mxu0 0.0
      %207 = vmatpush1.msra.mxu0 0.0
      %208 = vmatprep.subr.mxu0 0.0
      %209 = vmatpush1.msra.mxu0 0.0
      %210 = vmatprep.subr.mxu0 0.0
      %211 = vmatpush1.msra.mxu0 0.0
      %212 = vmatprep.subr.mxu0 0.0
      %213 = vmatpush1.msra.mxu0 0.0
      %214 = vmatprep.subr.mxu0 0.0
      %215 = vmatpush1.msra.mxu0 0.0
      %216 = vmatprep.subr.mxu0 0.0
      %217 = vmatpush1.msra.mxu0 0.0
      %218 = vmatprep.subr.mxu0 0.0
      %219 = vmatpush1.msra.mxu0 0.0
      %220 = vmatprep.subr.mxu0 0.0
      %221 = vmatpush1.msra.mxu0 0.0
      %222 = vmatprep.subr.mxu0 0.0
      %223 = vmatpush1.msra.mxu0 0.0
      %224 = vmatprep.mubr.f32.mxu0 0.0
      %225 = vmatmul.mubr.f32.gmra.mrb[0].mxu0 %v158
      %v226 = vpop.f32.mrb[0].mxu0
      %v227 = vadd.f32 %v154, %v226
      %v228 = vpop.f32.mrb[0].mxu0
      %229 = vdwg.mxu0
      %v230 = vxor.u32 %v227, 2147483648
      %v231 = vmul.f32 %v230, 1.442695
      %v232 = vpow.pop %v231
      %v233 = vadd.f32 %v232, 1.0
      %v234 = vrcp.pop %v233
      %v235 = vmul.f32 1.0, %v234
      %236 = vst.msk [vmem:[#allocation2] sm:$0x3] %vm53, %v235
    $region29: #{tpu_custom_call.1} parent=1 // pred_fallthru
      _
    // Predicated region
    $region30: #{tpu_custom_call.1} parent=1 // pred_check
      _
    $region31: #{tpu_custom_call.1} parent=1 // pred_check_branch
      %238 = sbr.rel (0) target = $region33
    $region32: #{tpu_custom_call.1} parent=1 // pred_region
      %s240 = ssub.s32 32, 32
      %241 = vsyncadd [#allocation3], %s240
      %s243 = sshll.u32 [#allocation2], 4
      %s244 = int_to_ptr.vmem [resolvable:$true] %s243
      %246 = dma.vmem_to_hbm [thread:$0]  %s244, 32, %s5, [#allocation3]
    $region33: #{tpu_custom_call.1} parent=1 // pred_fallthru
      _
    // Predicated region
    $region34: #{tpu_custom_call.1} parent=1 // pred_check
      _
    $region35: #{tpu_custom_call.1} parent=1 // pred_check_branch
      %248 = sbr.rel (0) target = $region37
    $region36: #{tpu_custom_call.1} parent=1 // pred_region
      %249 = dma.done [#allocation3], 32
    $region37: #{tpu_custom_call.1} parent=1 // pred_fallthru
      _
    %250 = vsyncpa [#allocation3], 1

</llo_original>
